<compile_context>
chip_gen: v7x
topology: tpu7x:2x2x1
jax: 0.10.0
libtpu: 0.0.40
codegen_flags: <defaults>
</compile_context>

<pallas_src>
import math

import jax
import jax.numpy as jnp
from jax.experimental import pallas as pl
from jax.experimental.pallas import tpu as pltpu


# ------------------------- buffer (matches register_buffer) -------------------

def make_positional_table(embedding_size, max_len=5000):
    """Same sinusoidal table as the PyTorch register_buffer: (max_len, 1, E)."""
    position = jnp.arange(max_len, dtype=jnp.float32)[:, None]
    div_term = jnp.exp(jnp.arange(0, embedding_size, 2, dtype=jnp.float32)
                       * (-math.log(10000.0) / embedding_size))
    angles = position * div_term                                   # (max_len, E//2)
    pe = jnp.zeros((max_len, embedding_size), jnp.float32)
    pe = pe.at[:, 0::2].set(jnp.sin(angles))
    pe = pe.at[:, 1::2].set(jnp.cos(angles))
    return pe[:, None, :]                                          # (max_len, 1, E)


# --------------------------------- kernel ------------------------------------

def _pe_add_kernel(scale_ref, x_ref, pe_ref, out_ref):
    # x_ref/out_ref: (tile_r, tile_c) in activation dtype
    # pe_ref:        (1, tile_c) float32 (resident across the row axis)
    # scale_ref:     (1,) float32 scalar in SMEM
    scale = scale_ref[0]
    acc = x_ref[...].astype(jnp.float32) + scale * pe_ref[...]     # f32 add, like torch
    out_ref[...] = acc.astype(out_ref.dtype)
    # TODO(synk): dropout is identity (eval mode); training-mode dropout would
    # need pltpu.prng_seed + pltpu.prng_random_bits masking here.


# --------------------------------- tiling ------------------------------------

def _vmem_capacity_bytes():
    """Per-core VMEM capacity; conservative fallback = v7x's 64 MiB per TC."""
    try:
        cap = getattr(pltpu.get_tpu_info(), "vmem_capacity_bytes", None)
        if cap:
            return int(cap)
    except Exception:
        pass
    return 64 * 1024 * 1024


def _choose_tiles(n_rows, row, itemsize, budget_bytes):
    """Pick (tile_r, tile_c) so the 4 double-buffered x/out tiles fit the budget,
    blocks obey the (sublane, 128) tiling rule for the dtype, and the grid has
    >= 2 steps whenever the shape allows (feeds both v7x TensorCores)."""
    sub = max(8, 32 // itemsize)                   # 8 f32 / 16 bf16 / 32 int8-fp8
    tile_budget_elems = max(1, budget_bytes // (4 * itemsize))

    if n_rows * row <= tile_budget_elems:
        tile_r, tile_c = n_rows, row               # whole slab fits
    else:
        # Column-tile first: lane-dense multiple of 128, ~128 KiB wide streams.
        col_cap = max(128, ((128 * 1024) // itemsize) // 128 * 128)
        tile_c = row if row <= col_cap else col_cap
        tile_r = tile_budget_elems // tile_c
        tile_r = max(sub, (tile_r // sub) * sub)
        if tile_r >= n_rows:
            tile_r = n_rows

    # Guarantee >= 2 grid steps when the shape permits (v7x megacore; the extra
    # step is ~0.35 us on single-TC chips).
    if pl.cdiv(n_rows, tile_r) * pl.cdiv(row, tile_c) < 2:
        if n_rows >= 2 * sub:
            tile_r = max(sub, ((n_rows // 2) // sub) * sub)
        elif row >= 2 * 128:
            half = -(-row // 2)
            cand = max(128, -(-half // 128) * 128)
            if cand < row:
                tile_c = cand
    return tile_r, tile_c


# --------------------------------- wrapper -----------------------------------

def positional_encoding(x, scale, pe):
    """x: (seq_len, batch, E) as in the PyTorch docstring.

    Returns out[i, j, :] = x[i, j, :] + scale * pe[j, :] -- identical to the
    PyTorch forward (the two permutes cancel) in eval mode.
    """
    D0, D1, E = x.shape
    pe2d = pe.reshape(pe.shape[0], pe.shape[-1]) if pe.ndim == 3 else pe
    assert pe2d.shape[1] == E and pe2d.shape[0] >= D1, "pe table too small / wrong E"

    row = D1 * E                                     # lane-dense fused last dim
    x2 = x.reshape(D0, row)
    pe_row = pe2d[:D1].astype(jnp.float32).reshape(1, row)
    scale_arr = jnp.asarray(scale, dtype=jnp.float32).reshape(1)

    itemsize = x.dtype.itemsize
    vmem_cap = _vmem_capacity_bytes()
    budget = min(24 * 1024 * 1024, vmem_cap // 4)    # bytes for the 4 x/out tiles
    vmem_limit = min(vmem_cap, max(32 * 1024 * 1024, 2 * budget))

    tile_r, tile_c = _choose_tiles(D0, row, itemsize, budget)
    grid = (pl.cdiv(D0, tile_r), pl.cdiv(row, tile_c))

    out2 = pl.pallas_call(
        _pe_add_kernel,
        out_shape=jax.ShapeDtypeStruct((D0, row), x.dtype),
        grid=grid,
        in_specs=[
            pl.BlockSpec(memory_space=pltpu.MemorySpace.SMEM),       # scale (scalar)
            pl.BlockSpec((tile_r, tile_c), lambda i, j: (i, j)),     # x rows
            pl.BlockSpec((1, tile_c), lambda i, j: (0, j)),          # pe (row-resident)
        ],
        out_specs=pl.BlockSpec((tile_r, tile_c), lambda i, j: (i, j)),
        input_output_aliases={1: 0},                 # out reuses x's HBM buffer
        cost_estimate=pl.CostEstimate(
            flops=2 * D0 * row,
            transcendentals=0,
            bytes_accessed=2 * D0 * row * itemsize + row * 4),
        compiler_params=pltpu.CompilerParams(
            dimension_semantics=("parallel", "parallel"),
            vmem_limit_bytes=vmem_limit),
    )(scale_arr, x2, pe_row)

    return out2.reshape(D0, D1, E)


# ----------------------------------- demo ------------------------------------

if __name__ == "__main__":
    key = jax.random.PRNGKey(0)
    # Documented layout: (seq_len, batch, emb)
    S, B, E = 16, 4, 128
    kx, _ = jax.random.split(key)
    x = jax.random.normal(kx, (S, B, E), jnp.float32)
    scale = jnp.float32(1.5)

    pe = make_positional_table(E, max_len=5000)      # (max_len, 1, E)

    out = positional_encoding(x, scale, pe)
    jax.block_until_ready(out)

    # pure-JAX reference mirroring the PyTorch forward exactly
    x_perm = jnp.transpose(x, (1, 0, 2))             # (batch, seq, E)
    ref_perm = x_perm + scale * pe[:x_perm.shape[0]]
    ref = jnp.transpose(ref_perm, (1, 0, 2))

    assert out.shape == x.shape
    assert jnp.allclose(out, ref, atol=1e-6, rtol=1e-6)
    print("KERNEL_OK")
</pallas_src>

<mosaic_0001>
module attributes {stable_mosaic.version = 11 : i64} {
  func.func @_pe_add_kernel(%arg0: i32, %arg1: i32, %arg2: memref<1xf32, #tpu.memory_space<smem>>, %arg3: memref<8x512xf32, #tpu.memory_space<vmem>>, %arg4: memref<1x512xf32, #tpu.memory_space<vmem>>, %arg5: memref<8x512xf32, #tpu.memory_space<vmem>>) attributes {dimension_semantics = [#tpu.dimension_semantics<parallel>, #tpu.dimension_semantics<parallel>], iteration_bounds = array<i64: 2, 1>, scalar_prefetch = 0 : i64, scratch_operands = 0 : i64, tpu.core_type = #tpu.core_type<tc>, window_params = [{transform_indices = @transform_0, window_bounds = array<i64: 1>}, {transform_indices = @transform_1, window_bounds = array<i64: 8, 512>}, {transform_indices = @transform_2, window_bounds = array<i64: 1, 512>}, {transform_indices = @transform_3, window_bounds = array<i64: 8, 512>}]} {
    %c0 = arith.constant 0 : index
    %0 = memref.load %arg2[%c0] : memref<1xf32, #tpu.memory_space<smem>>
    %c0_0 = arith.constant 0 : index
    %c0_1 = arith.constant 0 : index
    %1 = vector.load %arg3[%c0_0, %c0_1] : memref<8x512xf32, #tpu.memory_space<vmem>>, vector<8x512xf32>
    %c0_2 = arith.constant 0 : index
    %c0_3 = arith.constant 0 : index
    %2 = vector.load %arg4[%c0_2, %c0_3] : memref<1x512xf32, #tpu.memory_space<vmem>>, vector<1x512xf32>
    %3 = vector.broadcast %0 : f32 to vector<1x512xf32>
    %4 = arith.mulf %3, %2 : vector<1x512xf32>
    %5 = vector.broadcast %4 : vector<1x512xf32> to vector<8x512xf32>
    %6 = arith.addf %1, %5 : vector<8x512xf32>
    %c0_4 = arith.constant 0 : index
    %c0_5 = arith.constant 0 : index
    %7 = vector.load %arg5[%c0_4, %c0_5] : memref<8x512xf32, #tpu.memory_space<vmem>>, vector<8x512xf32>
    tpu.vector_store %arg5[%c0_4, %c0_5], %6 {strides = array<i32>} : memref<8x512xf32, #tpu.memory_space<vmem>>, vector<8x512xf32>,
    return
  }
  func.func @transform_0(%arg0: i32, %arg1: i32) -> i32 {
    %c0_i32 = arith.constant 0 : i32
    %c0_i32_0 = arith.constant 0 : i32
    return %c0_i32 : i32
  }
  func.func @transform_1(%arg0: i32, %arg1: i32) -> (i32, i32) {
    %c0_i32 = arith.constant 0 : i32
    return %arg0, %arg1 : i32, i32
  }
  func.func @transform_2(%arg0: i32, %arg1: i32) -> (i32, i32) {
    %c0_i32 = arith.constant 0 : i32
    %c0_i32_0 = arith.constant 0 : i32
    return %c0_i32, %arg1 : i32, i32
  }
  func.func @transform_3(%arg0: i32, %arg1: i32) -> (i32, i32) {
    %c0_i32 = arith.constant 0 : i32
    return %arg0, %arg1 : i32, i32
  }
}

</mosaic_0001>

<llo_original>
// kernel: tpu_custom_call.1
$region0: #{tpu_custom_call.1}
  #allocation0 [shape = 'u32[]', space=smem, size = 0x4, offset = 0x4, fixed_abs, tag = 'smem constant byte address 0x4 - core index']
  #allocation1 [shape = 'u32[144,128]{1,0:T(1,128)}', space=vmem, size = 0x12000, scoped, tag = 'internal scratch']
  #allocation2 [shape = 'f32[1]{0:T(128)S(6)}', space=smem, size = 0x200, scoped, tag = 'scoped memory for tpu_custom_call.1']
  %s0 = inlined_call_operand.<no memory space> [shape: f32[1], index: 0, kind: input, shape index: {}]
  %s1 = inlined_call_operand.hbm [shape: f32[16,512], index: 1, kind: input, shape index: {}, may-alias: {1,3}]
  %s2 = inlined_call_operand.vmem [shape: f32[1,512], index: 2, kind: input, shape index: {}]
  %s3 = inlined_call_operand.hbm [shape: f32[16,512], index: 3, kind: output, shape index: {}, may-alias: {1,3}]
  %s4 = sld [smem:[#allocation0]]
  $region49: #{tpu_custom_call.1} parent=0
    _
  %s6 = ssub.s32 1, %s4
  %s7 = scalar_select 0, %s6, %s4
  %8 = sst [smem:[#allocation2]] %s0
  $region1: #{tpu_custom_call.1} parent=0
    #allocation3 [shape = 'u8[32768]{0}', space=vmem, size = 0x8000, scoped, tag = 'input window, operand 1']
    #allocation4 [shape = 's32[2]{0}', space=sflag, size = 0x8, scoped, tag = 'scoped memory for tpu_custom_call.1']
    #allocation5 [shape = 's32[2]{0}', space=sflag, size = 0x8, scoped, tag = 'scoped memory for tpu_custom_call.1']
    #allocation6 [shape = 'u8[32768]{0}', space=vmem, size = 0x8000, scoped, tag = 'output window, operand 0']
    %9 = vsyncpa [#allocation4], 0
    %s10 = scalar_lea.sflag [#allocation4], 1
    %11 = vsyncpa %s10, 0
    %12 = vsyncpa [#allocation5], 0
    %s13 = scalar_lea.sflag [#allocation5], 1
    %14 = vsyncpa %s13, 0
    loop: start=0, step=1, limit=4
    $region2: #{tpu_custom_call.1} parent=1 // loop_pre_header
      _
    $region3: #{tpu_custom_call.1} parent=1 // loop_header
      %s16 = sphi 0, %s20
      %p17 = scmp.ge.s32.totalorder %s16, 4
      %s23 = sphi 0, %s35
      %s24 = sphi 0, %s31
      %s25 = sphi 0, %s23
      %s26 = sphi 0, %s24
      %s27 = sphi 0, %s25
      %s28 = sphi 0, %s26
      %s36 = sphi 0, %s36
      %s38 = sphi 0, %s36
      %s39 = sphi 0, %s38
      %s53 = sphi 0, %s39
      %s61 = sphi 0, %s63
      %s64 = sphi 0, %s61
      %s65 = sphi 0, %s64
      %s81 = sphi 0, %s65
      %s87 = sphi 0, %s89
      %s90 = sphi 0, %s87
      %s91 = sphi 0, %s90
      %s107 = sphi 0, %s91
      %s115 = sphi 0, %s117
      %s118 = sphi 0, %s115
      %s119 = sphi 0, %s118
      %s135 = sphi 0, %s119
    $region4: #{tpu_custom_call.1} parent=1 // loop_header_branch
      %19 = sbr.rel (%p17) target = $region8
    $region5: #{tpu_custom_call.1} parent=1 // loop_body
      %s21 = ssub.s32 %s16, 1
      %s22 = ssub.s32 %s16, 2
      %s29 = sadd.s32 1, %s24
      %p30 = scmp.ge.s32.totalorder %s29, 1
      %s31 = scalar_select %p30, 0, %s29
      %s32 = sadd.s32 1, %s23
      %s33 = scalar_select %p30, %s32, %s23
      %p34 = scmp.ge.s32.totalorder %s33, 2
      %s35 = scalar_select %p34, 0, %s33
      %s37 = sadd.s32 %s36, 1
      %p40 = scmp.eq.s32.totalorder %s16, 1
      %p41 = scmp.ne.s32.totalorder %s36, %s38
      %p42 = scmp.eq.s32.totalorder %s16, 0
      %p43 = por %p41, %p42
      %p44 = scmp.ne.s32.totalorder %s36, %s38
      %p45 = scmp.eq.s32.totalorder %s21, 1
      %p46 = por %p44, %p45
      %p47 = scmp.ne.s32.totalorder %s38, %s39
      %p48 = scmp.eq.s32.totalorder %s21, 0
      %p49 = por %p47, %p48
      %p50 = scmp.ne.s32.totalorder %s38, %s39
      %p51 = scmp.eq.s32.totalorder %s22, 1
      %p52 = por %p50, %p51
      %p54 = scmp.ne.s32.totalorder %s39, %s53
      %p55 = scmp.eq.s32.totalorder %s22, 0
      %p56 = por %p54, %p55
      %s57 = ssub.s32 %s23, %s35
      %s58 = ssub.s32 %s24, %s31
      %s59 = sor.u32 %s57, %s58
      %p60 = scmp.eq.s32.totalorder %s59, 0
      %s62 = sadd.s32 %s61, 1
      %s63 = scalar_select %p60, %s61, %s62
      %p66 = pneg %p60
      %p67 = scmp.eq.s32.totalorder %s16, 1
      %p68 = por %p66, %p67
      %p69 = scmp.ne.s32.totalorder %s61, %s64
      %p70 = scmp.eq.s32.totalorder %s16, 0
      %p71 = por %p69, %p70
      %p72 = scmp.ne.s32.totalorder %s61, %s64
      %p73 = scmp.eq.s32.totalorder %s21, 1
      %p74 = por %p72, %p73
      %p75 = scmp.ne.s32.totalorder %s64, %s65
      %p76 = scmp.eq.s32.totalorder %s21, 0
      %p77 = por %p75, %p76
      %p78 = scmp.ne.s32.totalorder %s64, %s65
      %p79 = scmp.eq.s32.totalorder %s22, 1
      %p80 = por %p78, %p79
      %p82 = scmp.ne.s32.totalorder %s65, %s81
      %p83 = scmp.eq.s32.totalorder %s22, 0
      %p84 = por %p82, %p83
      %s85 = ssub.s32 %s24, %s31
      %p86 = scmp.eq.s32.totalorder %s85, 0
      %s88 = sadd.s32 %s87, 1
      %s89 = scalar_select %p86, %s87, %s88
      %p92 = pneg %p86
      %p93 = scmp.eq.s32.totalorder %s16, 1
      %p94 = por %p92, %p93
      %p95 = scmp.ne.s32.totalorder %s87, %s90
      %p96 = scmp.eq.s32.totalorder %s16, 0
      %p97 = por %p95, %p96
      %p98 = scmp.ne.s32.totalorder %s87, %s90
      %p99 = scmp.eq.s32.totalorder %s21, 1
      %p100 = por %p98, %p99
      %p101 = scmp.ne.s32.totalorder %s90, %s91
      %p102 = scmp.eq.s32.totalorder %s21, 0
      %p103 = por %p101, %p102
      %p104 = scmp.ne.s32.totalorder %s90, %s91
      %p105 = scmp.eq.s32.totalorder %s22, 1
      %p106 = por %p104, %p105
      %p108 = scmp.ne.s32.totalorder %s91, %s107
      %p109 = scmp.eq.s32.totalorder %s22, 0
      %p110 = por %p108, %p109
      %s111 = ssub.s32 %s23, %s35
      %s112 = ssub.s32 %s24, %s31
      %s113 = sor.u32 %s111, %s112
      %p114 = scmp.eq.s32.totalorder %s113, 0
      %s116 = sadd.s32 %s115, 1
      %s117 = scalar_select %p114, %s115, %s116
      %p120 = pneg %p114
      %p121 = scmp.eq.s32.totalorder %s16, 1
      %p122 = por %p120, %p121
      %p123 = scmp.ne.s32.totalorder %s115, %s118
      %p124 = scmp.eq.s32.totalorder %s16, 0
      %p125 = por %p123, %p124
      %p126 = scmp.ne.s32.totalorder %s115, %s118
      %p127 = scmp.eq.s32.totalorder %s21, 1
      %p128 = por %p126, %p127
      %p129 = scmp.ne.s32.totalorder %s118, %s119
      %p130 = scmp.eq.s32.totalorder %s21, 0
      %p131 = por %p129, %p130
      %p132 = scmp.ne.s32.totalorder %s118, %s119
      %p133 = scmp.eq.s32.totalorder %s22, 1
      %p134 = por %p132, %p133
      %p136 = scmp.ne.s32.totalorder %s119, %s135
      %p137 = scmp.eq.s32.totalorder %s22, 0
      %p138 = por %p136, %p137
      %p139 = scmp.le.s32.totalorder 1, %s16
      %p140 = scmp.lt.s32.totalorder %s16, 3
      %p141 = pnand %p139, %p140
      %p142 = pneg %p141
      // Predicated region
      $region9: #{tpu_custom_call.1} parent=5 // pred_check
        _
      $region10: #{tpu_custom_call.1} parent=5 // pred_check_branch
        %144 = sbr.rel (%p141) target = $region12
      $region11: #{tpu_custom_call.1} parent=5 // pred_region
        %s145 = ssub.s32 %s16, 1
        // Predicated region
        $region13: #{tpu_custom_call.1} parent=11 // pred_check
          %p146 = pneg %p49
        $region14: #{tpu_custom_call.1} parent=11 // pred_check_branch
          %148 = sbr.rel (%p146) target = $region16
        $region15: #{tpu_custom_call.1} parent=11 // pred_region
          _
        $region16: #{tpu_custom_call.1} parent=11 // pred_fallthru
          _
        // Predicated region
        $region17: #{tpu_custom_call.1} parent=11 // pred_check
          %p149 = pneg %p103
        $region18: #{tpu_custom_call.1} parent=11 // pred_check_branch
          %151 = sbr.rel (%p149) target = $region20
        $region19: #{tpu_custom_call.1} parent=11 // pred_region
          %s152 = smul.u32 4, %s26
          %p153 = scmp.lt.s32.totalorder %s152, 3
          %s154 = scalar_select %p153, %s152, 3
          %s155 = scalar_lea.vmem %s2, %s154
          %s156 = smul.u32 4, %s26
        $region20: #{tpu_custom_call.1} parent=11 // pred_fallthru
          _
      $region12: #{tpu_custom_call.1} parent=5 // pred_fallthru
        _
      %p157 = scmp.lt.s32.totalorder %s16, 2
      // Predicated region
      $region21: #{tpu_custom_call.1} parent=5 // pred_check
        %p158 = pneg %p157
      $region22: #{tpu_custom_call.1} parent=5 // pred_check_branch
        %160 = sbr.rel (%p158) target = $region24
      $region23: #{tpu_custom_call.1} parent=5 // pred_region
        // Predicated region
        $region25: #{tpu_custom_call.1} parent=23 // pred_check
          %p161 = pneg %p71
        $region26: #{tpu_custom_call.1} parent=23 // pred_check_branch
          %163 = sbr.rel (%p161) target = $region28
        $region27: #{tpu_custom_call.1} parent=23 // pred_region
          %s164 = sand.u32 %s61, 1
          %s165 = scalar_lea.sflag [#allocation4], %s164
          %s166 = sand.u32 %s61, 1
          %s167 = smul.addr %s166, 32
          %s168 = scalar_lea.vmem [#allocation3], %s167
          %s169 = smul.u32 4, %s24
          %s171 = ssub.s32 512, 512
          %172 = vsyncadd %s165, %s171
          %s173 = smul.addr %s23, 4
          %s174 = sadd.s32 %s169, %s173
          %s175 = smul.addr %s174, 128
          %s176 = scalar_lea.hbm %s1, %s175
          %s178 = sshll.u32 %s168, 4
          %s179 = int_to_ptr.vmem [resolvable:$true] %s178
          %181 = dma.hbm_to_vmem [thread:$0]  %s176, 512, %s179, %s165
        $region28: #{tpu_custom_call.1} parent=23 // pred_fallthru
          _
      $region24: #{tpu_custom_call.1} parent=5 // pred_fallthru
        _
      %p182 = scmp.le.s32.totalorder 1, %s16
      %p183 = scmp.lt.s32.totalorder %s16, 3
      %p184 = pnand %p182, %p183
      %p185 = pneg %p184
      // Predicated region
      $region29: #{tpu_custom_call.1} parent=5 // pred_check
        _
      $region30: #{tpu_custom_call.1} parent=5 // pred_check_branch
        %187 = sbr.rel (%p184) target = $region32
      $region31: #{tpu_custom_call.1} parent=5 // pred_region
        %s188 = ssub.s32 %s16, 1
        %s189 = sand.u32 %s64, 1
        %s190 = scalar_lea.sflag [#allocation4], %s189
        %s191 = sand.u32 %s64, 1
        %s192 = smul.addr %s191, 32
        %s193 = scalar_lea.vmem [#allocation3], %s192
        // Predicated region
        $region33: #{tpu_custom_call.1} parent=31 // pred_check
          %p194 = pneg %p77
        $region34: #{tpu_custom_call.1} parent=31 // pred_check_branch
          %196 = sbr.rel (%p194) target = $region36
        $region35: #{tpu_custom_call.1} parent=31 // pred_region
          %197 = dma.done %s190, 512
        $region36: #{tpu_custom_call.1} parent=31 // pred_fallthru
          _
        %p198 = pneg %p49
        %p199 = pneg %p46
        %s200 = sand.u32 %s64, 1
        %s201 = scalar_lea.sflag [#allocation4], %s200
        %s202 = sand.u32 %s64, 1
        %s203 = smul.addr %s202, 32
        %s204 = scalar_lea.vmem [#allocation3], %s203
        %p205 = pneg %p77
        %p206 = pneg %p74
        %s207 = smul.u32 4, %s26
        %p208 = scmp.lt.s32.totalorder %s207, 3
        %s209 = scalar_select %p208, %s207, 3
        %s210 = scalar_lea.vmem %s2, %s209
        %p211 = pneg %p103
        %p212 = pneg %p100
        %p213 = pneg %p131
        %p214 = pneg %p128
        %s215 = sand.u32 %s118, 1
        %s216 = scalar_lea.sflag [#allocation5], %s215
        %s217 = sand.u32 %s118, 1
        %s218 = smul.addr %s217, 32
        %s219 = scalar_lea.vmem [#allocation6], %s218
        %s220 = smul.u32 4, %s26
        %s221 = smul.u32 4, %s26
        %p222 = scmp.lt.s32.totalorder %s221, 3
        %s223 = scalar_select %p222, %s221, 3
        %s224 = scalar_lea.vmem %s2, %s223
        %s225 = smul.u32 4, %s26
        %s226 = smul.u32 4, %s26
        %s227 = sld [smem:[#allocation2]]
        %v228 = vld [vmem:[%s193] sm:$0xff]
        %v229 = vld [vmem:[%s193 + $0x8] sm:$0xff]
        %v230 = vld [vmem:[%s193 + $0x10] sm:$0xff]
        %v231 = vld [vmem:[%s193 + $0x18] sm:$0xff]
        %v232 = vld [vmem:[%s224] sm:$0xf]
        %v233 = vstv %s227
        %v234 = vmul.f32 %v233, %v232
        %v236 = vlaneseq
        %v237 = vshrl.u32 %v236, 7
        %v238 = vsub.s32 0, %v237
        %v239 = vrot.slane %v234, %v238
        %v240 = vlaneseq
        %v241 = vshrl.u32 %v240, 7
        %v242 = vsub.s32 1, %v241
        %v243 = vrot.slane %v234, %v242
        %v244 = vlaneseq
        %v245 = vshrl.u32 %v244, 7
        %v246 = vsub.s32 2, %v245
        %v247 = vrot.slane %v234, %v246
        %v248 = vlaneseq
        %v249 = vshrl.u32 %v248, 7
        %v250 = vsub.s32 3, %v249
        %v251 = vrot.slane %v234, %v250
        %v256 = vadd.f32 %v228, %v239
        %v257 = vadd.f32 %v229, %v243
        %v258 = vadd.f32 %v230, %v247
        %v259 = vadd.f32 %v231, %v251
        %260 = vst [vmem:[%s219] sm:$0xff] %v256
        %261 = vst [vmem:[%s219 + $0x8] sm:$0xff] %v257
        %262 = vst [vmem:[%s219 + $0x10] sm:$0xff] %v258
        %263 = vst [vmem:[%s219 + $0x18] sm:$0xff] %v259
        %s264 = sand.u32 %s118, 1
        %s265 = scalar_lea.sflag [#allocation5], %s264
        %s266 = sand.u32 %s118, 1
        %s267 = smul.addr %s266, 32
        %s268 = scalar_lea.vmem [#allocation6], %s267
        // Predicated region
        $region37: #{tpu_custom_call.1} parent=31 // pred_check
          %p269 = pneg %p128
        $region38: #{tpu_custom_call.1} parent=31 // pred_check_branch
          %271 = sbr.rel (%p269) target = $region40
        $region39: #{tpu_custom_call.1} parent=31 // pred_region
          %s272 = smul.u32 4, %s26
          %s274 = ssub.s32 512, 512
          %275 = vsyncadd %s265, %s274
          %s276 = smul.addr %s25, 4
          %s277 = sadd.s32 %s272, %s276
          %s278 = smul.addr %s277, 128
          %s279 = scalar_lea.hbm %s3, %s278
          %s281 = sshll.u32 %s268, 4
          %s282 = int_to_ptr.vmem [resolvable:$true] %s281
          %284 = dma.vmem_to_hbm [thread:$0]  %s282, 512, %s279, %s265
        $region40: #{tpu_custom_call.1} parent=31 // pred_fallthru
          _
      $region32: #{tpu_custom_call.1} parent=5 // pred_fallthru
        _
      %p285 = scmp.le.s32.totalorder 2, %s16
      // Predicated region
      $region41: #{tpu_custom_call.1} parent=5 // pred_check
        %p286 = pneg %p285
      $region42: #{tpu_custom_call.1} parent=5 // pred_check_branch
        %288 = sbr.rel (%p286) target = $region44
      $region43: #{tpu_custom_call.1} parent=5 // pred_region
        %s289 = ssub.s32 %s16, 2
        // Predicated region
        $region45: #{tpu_custom_call.1} parent=43 // pred_check
          %p290 = pneg %p134
        $region46: #{tpu_custom_call.1} parent=43 // pred_check_branch
          %292 = sbr.rel (%p290) target = $region48
        $region47: #{tpu_custom_call.1} parent=43 // pred_region
          %s293 = sand.u32 %s119, 1
          %s294 = scalar_lea.sflag [#allocation5], %s293
          %s295 = sand.u32 %s119, 1
          %s296 = smul.addr %s295, 32
          %s297 = scalar_lea.vmem [#allocation6], %s296
          %298 = dma.done %s294, 512
        $region48: #{tpu_custom_call.1} parent=43 // pred_fallthru
          _
      $region44: #{tpu_custom_call.1} parent=5 // pred_fallthru
        _
    $region6: #{tpu_custom_call.1} parent=1 // loop_footer
      %s20 = sadd.s32 1, %s16
    $region7: #{tpu_custom_call.1} parent=1 // loop_footer_branch
      %15 = sbr.rel target = $region3
    $region8: #{tpu_custom_call.1} parent=1 // loop_exit
      _
    %299 = vsyncpa [#allocation4], 1
    %s300 = scalar_lea.sflag [#allocation4], 1
    %301 = vsyncpa %s300, 1
    %302 = vsyncpa [#allocation5], 1
    %s303 = scalar_lea.sflag [#allocation5], 1
    %304 = vsyncpa %s303, 1

</llo_original>
